<compile_context>
chip_gen: v5e
topology: v5e:2x2
jax: 0.10.0
libtpu: 0.0.40
codegen_flags: <defaults>
</compile_context>

<pallas_src>
import functools

import jax
import jax.numpy as jnp
from jax.experimental import pallas as pl
from jax.experimental.pallas import tpu as pltpu

MU = 0.01      # MoELayer default mu
LANES = 128    # lane-dense packed output width (lane 0 = q1, lane 1 = q2, lane 2 = reg)


# ----------------------------------------------------------------------------
# Pallas kernel: both Q branches, one batch tile per grid point
# ----------------------------------------------------------------------------
def q_fused_kernel(base_ref, act_ref, onehot_ref,
                   w1o_ref, w1a_ref, b1_ref,
                   rx_ref, rte_ref,
                   ewa_ref, eba_ref, ewb_ref, ebb_ref,
                   rexp_ref, w6p_ref, b6p_ref, out_ref):
    f32 = jnp.float32
    E2 = rx_ref.shape[1]          # 2 * num_experts (both branches fused on lanes)
    E = E2 // 2

    # x1 = relu(linear1([obs, action])) for BOTH branches (concat folded into
    # two matmul halves; branch fusion on the lane dim -> [TB, 2H])
    x1 = (jnp.dot(base_ref[...], w1o_ref[...], preferred_element_type=f32)
          + jnp.dot(act_ref[...], w1a_ref[...], preferred_element_type=f32)
          + b1_ref[...])
    x1 = jnp.maximum(x1, 0.0)

    # routing logits; task-embedding path pre-folded at pack time (rte = temb @ re)
    logits = (jnp.dot(x1, rx_ref[...], preferred_element_type=f32)
              + jnp.dot(onehot_ref[...], rte_ref[...], preferred_element_type=f32))  # [TB, 2E]

    # per-branch softmax over lane groups [0:E] and [E:2E] (mask-based, VPU only)
    grp = jax.lax.broadcasted_iota(jnp.int32, logits.shape, 1) >= E
    neg = jnp.float32(-jnp.inf)
    m1 = jnp.max(jnp.where(grp, neg, logits), axis=-1, keepdims=True)
    m2 = jnp.max(jnp.where(grp, logits, neg), axis=-1, keepdims=True)
    e = jnp.exp(logits - jnp.where(grp, m2, m1))
    s1 = jnp.sum(jnp.where(grp, 0.0, e), axis=-1, keepdims=True)
    s2 = jnp.sum(jnp.where(grp, e, 0.0), axis=-1, keepdims=True)
    ew = e / jnp.where(grp, s2, s1)                        # exact reciprocal   [TB, 2E]

    # all 2*E expert MLPs in two block-diagonal MXU passes  ([TB, 2EH])
    h = jnp.dot(x1, ewa_ref[...], preferred_element_type=f32) + eba_ref[...]
    h = jnp.maximum(h, 0.0)
    h = jnp.dot(h, ewb_ref[...], preferred_element_type=f32) + ebb_ref[...]
    h = jnp.maximum(h, 0.0)

    # expert-weight broadcast (block-ones MXU) + lane-dense linear6 selector:
    # q1 lands in lane 0, q2 in lane 1 of a [TB, 128] tile.
    ew_rep = jnp.dot(ew, rexp_ref[...], preferred_element_type=f32)        # [TB, 2EH]
    qpack = (jnp.dot(h * ew_rep, w6p_ref[...], preferred_element_type=f32)
             + b6p_ref[...])                                               # [TB, 128]

    # reg1 + reg2 = -(1/E) * mu * sum(log(ew + 1e-6)) over all 2E lanes
    reg = (-(1.0 / E) * MU
           * jnp.sum(jnp.log(ew + 1e-6), axis=-1, keepdims=True))          # [TB, 1]

    # single lane-dense store: lane 0 = q1, lane 1 = q2, lane 2 = reg, rest 0
    col = jax.lax.broadcasted_iota(jnp.int32, out_ref.shape, 1)
    out_ref[...] = jnp.where(col == 2, reg, qpack)


# ----------------------------------------------------------------------------
# pallas_call wrapper: full QNetwork forward (both branches, one call)
# ----------------------------------------------------------------------------
def format_obs(obs, num_tasks):
    """utils.format_obs: split trailing one-hot task id off the observation."""
    base = obs[:, :obs.shape[1] - num_tasks]
    onehot = obs[:, obs.shape[1] - num_tasks:]
    return base, onehot


def _pick_tile(B, cap=512):
    """Largest batch tile <= cap (multiple of 8) dividing B; pipeline for big B."""
    if B <= cap:
        return B
    for tb in range(cap, 7, -8):
        if tb % 8 == 0 and B % tb == 0:
            return tb
    return B


def qnetwork_forward(obs, action, packed, num_tasks):
    base, onehot = format_obs(obs, num_tasks)
    B, OB = base.shape
    A = action.shape[1]
    T = onehot.shape[1]
    H2 = packed["w1o"].shape[1]      # 2 * hidden
    E2 = packed["rx"].shape[1]       # 2 * num_experts
    EH2 = packed["ewa"].shape[1]     # 2 * num_experts * hidden

    TB = _pick_tile(B)
    grid = (B // TB,)

    row = lambda i: (i, 0)           # batch-tiled inputs / output
    rep = lambda i: (0, 0)           # batch-invariant weights (VMEM-resident)

    flops = 2 * B * (OB * H2 + A * H2 + H2 * E2 + T * E2
                     + H2 * EH2 + EH2 * EH2 + E2 * EH2 + EH2 * LANES)
    transcendentals = B * (2 * E2 + 2)
    weight_elems = (OB * H2 + A * H2 + H2 + H2 * E2 + T * E2 + H2 * EH2 + EH2
                    + EH2 * EH2 + EH2 + E2 * EH2 + EH2 * LANES + LANES)
    bytes_accessed = 4 * (B * (OB + A + T + LANES) + weight_elems)

    out = pl.pallas_call(
        q_fused_kernel,
        out_shape=jax.ShapeDtypeStruct((B, LANES), jnp.float32),
        grid=grid,
        in_specs=[
            pl.BlockSpec((TB, OB), row),       # obs (task id stripped)
            pl.BlockSpec((TB, A), row),        # action
            pl.BlockSpec((TB, T), row),        # task one-hot
            pl.BlockSpec((OB, H2), rep),       # linear1 W (obs half, both branches)
            pl.BlockSpec((A, H2), rep),        # linear1 W (action half)
            pl.BlockSpec((1, H2), rep),        # linear1 b
            pl.BlockSpec((H2, E2), rep),       # routing matrix x-part (block-diag)
            pl.BlockSpec((T, E2), rep),        # routing task-emb path (prefolded)
            pl.BlockSpec((H2, EH2), rep),      # experts layer-0 W (block-diag)
            pl.BlockSpec((1, EH2), rep),       # experts layer-0 b
            pl.BlockSpec((EH2, EH2), rep),     # experts layer-1 W (block-diag)
            pl.BlockSpec((1, EH2), rep),       # experts layer-1 b
            pl.BlockSpec((E2, EH2), rep),      # expert-weight broadcast (block-ones)
            pl.BlockSpec((EH2, LANES), rep),   # linear6 lane-dense selector
            pl.BlockSpec((1, LANES), rep),     # linear6 bias (lane 0 / lane 1)
        ],
        out_specs=pl.BlockSpec((TB, LANES), row),
        compiler_params=pltpu.CompilerParams(
            dimension_semantics=("parallel",)),
        cost_estimate=pl.CostEstimate(
            flops=flops, transcendentals=transcendentals,
            bytes_accessed=bytes_accessed),
    )(base, action, onehot,
      packed["w1o"], packed["w1a"], packed["b1"],
      packed["rx"], packed["rte"],
      packed["ewa"], packed["eba"], packed["ewb"], packed["ebb"],
      packed["rexp"], packed["w6pack"], packed["b6pack"])

    q1 = out[:, 0:1]
    q2 = out[:, 1:2]
    reg = out[:, 2]
    return q1, q2, reg


# ----------------------------------------------------------------------------
# Parameter init (natural per-branch layout, mirrors the PyTorch module)
# ----------------------------------------------------------------------------
def _init_linear(key, fan_in, fan_out):
    kw, kb = jax.random.split(key)
    bound = 1.0 / jnp.sqrt(jnp.float32(fan_in))
    w = jax.random.uniform(kw, (fan_in, fan_out), jnp.float32, -bound, bound)
    b = jax.random.uniform(kb, (1, fan_out), jnp.float32, -bound, bound)
    return w, b


def init_branch(key, in_dim, hidden, num_tasks, num_experts, emb_dim):
    keys = jax.random.split(key, 6)
    w1, b1 = _init_linear(keys[0], in_dim, hidden)
    temb = jax.random.normal(keys[1], (num_tasks, emb_dim), jnp.float32) * 0.1
    routing = (jax.random.normal(keys[2], (hidden + emb_dim, num_experts),
                                 jnp.float32)
               / jnp.sqrt(jnp.float32(hidden + emb_dim)))
    rx, re = routing[:hidden], routing[hidden:]
    ekeys = jax.random.split(keys[3], 2 * num_experts)
    ewa, eba, ewb, ebb = [], [], [], []
    for k in range(num_experts):
        wa, ba = _init_linear(ekeys[2 * k], hidden, hidden)
        wb, bb = _init_linear(ekeys[2 * k + 1], hidden, hidden)
        ewa.append(wa); eba.append(ba); ewb.append(wb); ebb.append(bb)
    w6, b6 = _init_linear(keys[4], hidden, 1)
    return dict(w1=w1, b1=b1, temb=temb, rx=rx, re=re,
                ewa=jnp.stack(ewa), eba=jnp.stack(eba),
                ewb=jnp.stack(ewb), ebb=jnp.stack(ebb), w6=w6, b6=b6)


# ----------------------------------------------------------------------------
# One-time packing: natural per-branch params -> fused (branch-on-lanes) layout
# ----------------------------------------------------------------------------
def _block_diag(*mats):
    rows = sum(m.shape[0] for m in mats)
    cols = sum(m.shape[1] for m in mats)
    out = jnp.zeros((rows, cols), mats[0].dtype)
    r = c = 0
    for m in mats:
        out = out.at[r:r + m.shape[0], c:c + m.shape[1]].set(m)
        r += m.shape[0]; c += m.shape[1]
    return out


def pack_params(params, obs_base_dim):
    p1, p2 = params["branch1"], params["branch2"]
    E, H, _ = p1["ewa"].shape
    EH = E * H
    hi = jax.lax.Precision.HIGHEST

    def branch_pieces(p):
        ewa = jnp.concatenate([p["ewa"][k] for k in range(E)], axis=1)      # [H, EH]
        eba = jnp.concatenate([p["eba"][k] for k in range(E)], axis=1)      # [1, EH]
        ewb = _block_diag(*[p["ewb"][k] for k in range(E)])                 # [EH, EH]
        ebb = jnp.concatenate([p["ebb"][k] for k in range(E)], axis=1)      # [1, EH]
        rte = jnp.dot(p["temb"], p["re"], precision=hi)                     # [T, E]
        return ewa, eba, ewb, ebb, rte

    ewa1, eba1, ewb1, ebb1, rte1 = branch_pieces(p1)
    ewa2, eba2, ewb2, ebb2, rte2 = branch_pieces(p2)

    w1f = jnp.concatenate([p1["w1"], p2["w1"]], axis=1)                     # [IN, 2H]
    packed = dict(
        w1o=w1f[:obs_base_dim],                                             # [OB, 2H]
        w1a=w1f[obs_base_dim:],                                             # [A, 2H]
        b1=jnp.concatenate([p1["b1"], p2["b1"]], axis=1),                   # [1, 2H]
        rx=_block_diag(p1["rx"], p2["rx"]),                                 # [2H, 2E]
        rte=jnp.concatenate([rte1, rte2], axis=1),                          # [T, 2E]
        ewa=_block_diag(ewa1, ewa2),                                        # [2H, 2EH]
        eba=jnp.concatenate([eba1, eba2], axis=1),                          # [1, 2EH]
        ewb=_block_diag(ewb1, ewb2),                                        # [2EH, 2EH]
        ebb=jnp.concatenate([ebb1, ebb2], axis=1),                          # [1, 2EH]
    )
    # expert-weight broadcast matrix: [2E, 2EH] block-ones
    packed["rexp"] = _block_diag(*([jnp.ones((1, H), jnp.float32)] * (2 * E)))
    # linear6 packed into a lane-dense selector: lane 0 <- q1, lane 1 <- q2
    w6pack = jnp.zeros((2 * EH, LANES), jnp.float32)
    w6pack = w6pack.at[:EH, 0].set(jnp.tile(p1["w6"][:, 0], E))
    w6pack = w6pack.at[EH:, 1].set(jnp.tile(p2["w6"][:, 0], E))
    packed["w6pack"] = w6pack
    b6pack = jnp.zeros((1, LANES), jnp.float32)
    b6pack = b6pack.at[0, 0].set(p1["b6"][0, 0]).at[0, 1].set(p2["b6"][0, 0])
    packed["b6pack"] = b6pack
    return packed


# ----------------------------------------------------------------------------
# Pure-JAX reference (mirrors the PyTorch semantics, natural param layout)
# ----------------------------------------------------------------------------
def q_branch_ref(xu, onehot, p):
    x1 = jax.nn.relu(xu @ p["w1"] + p["b1"])
    emb = onehot @ p["temb"]
    ew = jax.nn.softmax(x1 @ p["rx"] + emb @ p["re"], axis=-1)
    outs = []
    for k in range(p["ewa"].shape[0]):
        h = jax.nn.relu(x1 @ p["ewa"][k] + p["eba"][k])
        h = jax.nn.relu(h @ p["ewb"][k] + p["ebb"][k])
        outs.append(h)
    eo = jnp.stack(outs, axis=1)                        # [B, E, H]
    tower = jnp.einsum('kn,kni->ki', ew, eo)
    q = tower @ p["w6"] + p["b6"]
    reg = -(1.0 / p["ewa"].shape[0]) * MU * jnp.sum(jnp.log(ew + 1e-6), axis=-1)
    return q, reg


if __name__ == "__main__":
    OBS_SIZE, ACTION_SIZE, HIDDEN = 16, 4, 32
    NUM_TASKS, NUM_EXPERTS, EMB_DIM = 10, 3, 100
    B = 8
    IN_DIM = OBS_SIZE - NUM_TASKS + ACTION_SIZE

    key = jax.random.PRNGKey(0)
    k_obs, k_act, k_task, k_p1, k_p2 = jax.random.split(key, 5)

    base = jax.random.normal(k_obs, (B, OBS_SIZE - NUM_TASKS), jnp.float32)
    task = jax.random.randint(k_task, (B,), 0, NUM_TASKS)
    obs = jnp.concatenate(
        [base, jax.nn.one_hot(task, NUM_TASKS, dtype=jnp.float32)], axis=1)
    action = jax.random.normal(k_act, (B, ACTION_SIZE), jnp.float32)

    params = {
        "branch1": init_branch(k_p1, IN_DIM, HIDDEN, NUM_TASKS, NUM_EXPERTS, EMB_DIM),
        "branch2": init_branch(k_p2, IN_DIM, HIDDEN, NUM_TASKS, NUM_EXPERTS, EMB_DIM),
    }
    packed = pack_params(params, OBS_SIZE - NUM_TASKS)

    fwd = jax.jit(functools.partial(qnetwork_forward, num_tasks=NUM_TASKS))
    q1, q2, reg = fwd(obs, action, packed)
    jax.block_until_ready((q1, q2, reg))

    # correctness check against pure-JAX reference
    base_o, onehot = format_obs(obs, NUM_TASKS)
    xu = jnp.concatenate([base_o, action], axis=1)
    q1r, r1r = q_branch_ref(xu, onehot, params["branch1"])
    q2r, r2r = q_branch_ref(xu, onehot, params["branch2"])
    assert q1.shape == (B, 1) and q2.shape == (B, 1) and reg.shape == (B,)
    assert jnp.allclose(q1, q1r, rtol=5e-3, atol=5e-4)
    assert jnp.allclose(q2, q2r, rtol=5e-3, atol=5e-4)
    assert jnp.allclose(reg, r1r + r2r, rtol=5e-3, atol=5e-4)

    print("KERNEL_OK")
</pallas_src>

<mosaic_0001>
module attributes {stable_mosaic.version = 11 : i64} {
  func.func @q_fused_kernel(%arg0: i32, %arg1: memref<8x6xf32, #tpu.memory_space<vmem>>, %arg2: memref<8x4xf32, #tpu.memory_space<vmem>>, %arg3: memref<8x10xf32, #tpu.memory_space<vmem>>, %arg4: memref<6x64xf32, #tpu.memory_space<vmem>>, %arg5: memref<4x64xf32, #tpu.memory_space<vmem>>, %arg6: memref<1x64xf32, #tpu.memory_space<vmem>>, %arg7: memref<64x6xf32, #tpu.memory_space<vmem>>, %arg8: memref<10x6xf32, #tpu.memory_space<vmem>>, %arg9: memref<64x192xf32, #tpu.memory_space<vmem>>, %arg10: memref<1x192xf32, #tpu.memory_space<vmem>>, %arg11: memref<192x192xf32, #tpu.memory_space<vmem>>, %arg12: memref<1x192xf32, #tpu.memory_space<vmem>>, %arg13: memref<6x192xf32, #tpu.memory_space<vmem>>, %arg14: memref<192x128xf32, #tpu.memory_space<vmem>>, %arg15: memref<1x128xf32, #tpu.memory_space<vmem>>, %arg16: memref<8x128xf32, #tpu.memory_space<vmem>>) attributes {dimension_semantics = [#tpu.dimension_semantics<parallel>], iteration_bounds = array<i64: 1>, scalar_prefetch = 0 : i64, scratch_operands = 0 : i64, tpu.core_type = #tpu.core_type<tc>, window_params = [{transform_indices = @transform_0, window_bounds = array<i64: 8, 6>}, {transform_indices = @transform_1, window_bounds = array<i64: 8, 4>}, {transform_indices = @transform_2, window_bounds = array<i64: 8, 10>}, {pipeline_mode = #tpu.pipeline_mode<synchronous>, transform_indices = @transform_3, window_bounds = array<i64: 6, 64>}, {pipeline_mode = #tpu.pipeline_mode<synchronous>, transform_indices = @transform_4, window_bounds = array<i64: 4, 64>}, {pipeline_mode = #tpu.pipeline_mode<synchronous>, transform_indices = @transform_5, window_bounds = array<i64: 1, 64>}, {pipeline_mode = #tpu.pipeline_mode<synchronous>, transform_indices = @transform_6, window_bounds = array<i64: 64, 6>}, {pipeline_mode = #tpu.pipeline_mode<synchronous>, transform_indices = @transform_7, window_bounds = array<i64: 10, 6>}, {pipeline_mode = #tpu.pipeline_mode<synchronous>, transform_indices = @transform_8, window_bounds = array<i64: 64, 192>}, {pipeline_mode = #tpu.pipeline_mode<synchronous>, transform_indices = @transform_9, window_bounds = array<i64: 1, 192>}, {pipeline_mode = #tpu.pipeline_mode<synchronous>, transform_indices = @transform_10, window_bounds = array<i64: 192, 192>}, {pipeline_mode = #tpu.pipeline_mode<synchronous>, transform_indices = @transform_11, window_bounds = array<i64: 1, 192>}, {pipeline_mode = #tpu.pipeline_mode<synchronous>, transform_indices = @transform_12, window_bounds = array<i64: 6, 192>}, {pipeline_mode = #tpu.pipeline_mode<synchronous>, transform_indices = @transform_13, window_bounds = array<i64: 192, 128>}, {pipeline_mode = #tpu.pipeline_mode<synchronous>, transform_indices = @transform_14, window_bounds = array<i64: 1, 128>}, {transform_indices = @transform_15, window_bounds = array<i64: 8, 128>}]} {
    %c0 = arith.constant 0 : index
    %c0_0 = arith.constant 0 : index
    %0 = vector.load %arg1[%c0, %c0_0] : memref<8x6xf32, #tpu.memory_space<vmem>>, vector<8x6xf32>
    %c0_1 = arith.constant 0 : index
    %c0_2 = arith.constant 0 : index
    %1 = vector.load %arg4[%c0_1, %c0_2] : memref<6x64xf32, #tpu.memory_space<vmem>>, vector<6x64xf32>
    %cst = arith.constant dense<0.000000e+00> : vector<8x64xf32>
    %2 = tpu.matmul %0, %1, %cst {dimension_numbers = #tpu.dot_dimension_numbers<[1], [0], [0], [1], [0, 0, 1, 1], [], []>} : vector<8x6xf32>, vector<6x64xf32>, vector<8x64xf32> -> vector<8x64xf32>
    %c0_3 = arith.constant 0 : index
    %c0_4 = arith.constant 0 : index
    %3 = vector.load %arg2[%c0_3, %c0_4] : memref<8x4xf32, #tpu.memory_space<vmem>>, vector<8x4xf32>
    %c0_5 = arith.constant 0 : index
    %c0_6 = arith.constant 0 : index
    %4 = vector.load %arg5[%c0_5, %c0_6] : memref<4x64xf32, #tpu.memory_space<vmem>>, vector<4x64xf32>
    %cst_7 = arith.constant dense<0.000000e+00> : vector<8x64xf32>
    %5 = tpu.matmul %3, %4, %cst_7 {dimension_numbers = #tpu.dot_dimension_numbers<[1], [0], [0], [1], [0, 0, 1, 1], [], []>} : vector<8x4xf32>, vector<4x64xf32>, vector<8x64xf32> -> vector<8x64xf32>
    %6 = arith.addf %2, %5 : vector<8x64xf32>
    %c0_8 = arith.constant 0 : index
    %c0_9 = arith.constant 0 : index
    %7 = vector.load %arg6[%c0_8, %c0_9] : memref<1x64xf32, #tpu.memory_space<vmem>>, vector<1x64xf32>
    %8 = vector.broadcast %7 : vector<1x64xf32> to vector<8x64xf32>
    %9 = arith.addf %6, %8 : vector<8x64xf32>
    %cst_10 = arith.constant 0.000000e+00 : f32
    %10 = vector.broadcast %cst_10 : f32 to vector<8x64xf32>
    %11 = arith.maximumf %9, %10 : vector<8x64xf32>
    %c0_11 = arith.constant 0 : index
    %c0_12 = arith.constant 0 : index
    %12 = vector.load %arg7[%c0_11, %c0_12] : memref<64x6xf32, #tpu.memory_space<vmem>>, vector<64x6xf32>
    %cst_13 = arith.constant dense<0.000000e+00> : vector<8x6xf32>
    %13 = tpu.matmul %11, %12, %cst_13 {dimension_numbers = #tpu.dot_dimension_numbers<[1], [0], [0], [1], [0, 0, 1, 1], [], []>} : vector<8x64xf32>, vector<64x6xf32>, vector<8x6xf32> -> vector<8x6xf32>
    %c0_14 = arith.constant 0 : index
    %c0_15 = arith.constant 0 : index
    %14 = vector.load %arg3[%c0_14, %c0_15] : memref<8x10xf32, #tpu.memory_space<vmem>>, vector<8x10xf32>
    %c0_16 = arith.constant 0 : index
    %c0_17 = arith.constant 0 : index
    %15 = vector.load %arg8[%c0_16, %c0_17] : memref<10x6xf32, #tpu.memory_space<vmem>>, vector<10x6xf32>
    %cst_18 = arith.constant dense<0.000000e+00> : vector<8x6xf32>
    %16 = tpu.matmul %14, %15, %cst_18 {dimension_numbers = #tpu.dot_dimension_numbers<[1], [0], [0], [1], [0, 0, 1, 1], [], []>} : vector<8x10xf32>, vector<10x6xf32>, vector<8x6xf32> -> vector<8x6xf32>
    %17 = arith.addf %13, %16 : vector<8x6xf32>
    %18 = tpu.iota {dimensions = array<i32: 1>} : vector<8x6xi32>
    %c3_i32 = arith.constant 3 : i32
    %19 = vector.broadcast %c3_i32 : i32 to vector<8x6xi32>
    %20 = arith.cmpi sge, %18, %19 : vector<8x6xi32>
    %cst_19 = arith.constant 0xFF800000 : f32
    %21 = vector.broadcast %cst_19 : f32 to vector<8x6xf32>
    %22 = arith.select %20, %21, %17 : vector<8x6xi1>, vector<8x6xf32>
    %cst_20 = arith.constant dense<0xFF800000> : vector<8xf32>
    %23 = vector.multi_reduction <maximumf>, %22, %cst_20 [1] : vector<8x6xf32> to vector<8xf32>
    %24 = vector.shape_cast %23 : vector<8xf32> to vector<8x1xf32>
    %cst_21 = arith.constant 0xFF800000 : f32
    %25 = vector.broadcast %cst_21 : f32 to vector<8x6xf32>
    %26 = arith.select %20, %17, %25 : vector<8x6xi1>, vector<8x6xf32>
    %cst_22 = arith.constant dense<0xFF800000> : vector<8xf32>
    %27 = vector.multi_reduction <maximumf>, %26, %cst_22 [1] : vector<8x6xf32> to vector<8xf32>
    %28 = vector.shape_cast %27 : vector<8xf32> to vector<8x1xf32>
    %29 = vector.shape_cast %28 : vector<8x1xf32> to vector<8x1xf32>
    %30 = vector.broadcast %29 : vector<8x1xf32> to vector<8x6xf32>
    %31 = vector.shape_cast %24 : vector<8x1xf32> to vector<8x1xf32>
    %32 = vector.broadcast %31 : vector<8x1xf32> to vector<8x6xf32>
    %33 = arith.select %20, %30, %32 : vector<8x6xi1>, vector<8x6xf32>
    %34 = arith.subf %17, %33 : vector<8x6xf32>
    %35 = math.exp %34 : vector<8x6xf32>
    %cst_23 = arith.constant 0.000000e+00 : f32
    %36 = vector.broadcast %cst_23 : f32 to vector<8x6xf32>
    %37 = arith.select %20, %36, %35 : vector<8x6xi1>, vector<8x6xf32>
    %cst_24 = arith.constant dense<0.000000e+00> : vector<8xf32>
    %38 = vector.multi_reduction <add>, %37, %cst_24 [1] : vector<8x6xf32> to vector<8xf32>
    %39 = vector.shape_cast %38 : vector<8xf32> to vector<8x1xf32>
    %cst_25 = arith.constant 0.000000e+00 : f32
    %40 = vector.broadcast %cst_25 : f32 to vector<8x6xf32>
    %41 = arith.select %20, %35, %40 : vector<8x6xi1>, vector<8x6xf32>
    %cst_26 = arith.constant dense<0.000000e+00> : vector<8xf32>
    %42 = vector.multi_reduction <add>, %41, %cst_26 [1] : vector<8x6xf32> to vector<8xf32>
    %43 = vector.shape_cast %42 : vector<8xf32> to vector<8x1xf32>
    %44 = vector.shape_cast %43 : vector<8x1xf32> to vector<8x1xf32>
    %45 = vector.broadcast %44 : vector<8x1xf32> to vector<8x6xf32>
    %46 = vector.shape_cast %39 : vector<8x1xf32> to vector<8x1xf32>
    %47 = vector.broadcast %46 : vector<8x1xf32> to vector<8x6xf32>
    %48 = arith.select %20, %45, %47 : vector<8x6xi1>, vector<8x6xf32>
    %49 = arith.divf %35, %48 : vector<8x6xf32>
    %c0_27 = arith.constant 0 : index
    %c0_28 = arith.constant 0 : index
    %50 = vector.load %arg9[%c0_27, %c0_28] : memref<64x192xf32, #tpu.memory_space<vmem>>, vector<64x192xf32>
    %cst_29 = arith.constant dense<0.000000e+00> : vector<8x192xf32>
    %51 = tpu.matmul %11, %50, %cst_29 {dimension_numbers = #tpu.dot_dimension_numbers<[1], [0], [0], [1], [0, 0, 1, 1], [], []>} : vector<8x64xf32>, vector<64x192xf32>, vector<8x192xf32> -> vector<8x192xf32>
    %c0_30 = arith.constant 0 : index
    %c0_31 = arith.constant 0 : index
    %52 = vector.load %arg10[%c0_30, %c0_31] : memref<1x192xf32, #tpu.memory_space<vmem>>, vector<1x192xf32>
    %53 = vector.broadcast %52 : vector<1x192xf32> to vector<8x192xf32>
    %54 = arith.addf %51, %53 : vector<8x192xf32>
    %cst_32 = arith.constant 0.000000e+00 : f32
    %55 = vector.broadcast %cst_32 : f32 to vector<8x192xf32>
    %56 = arith.maximumf %54, %55 : vector<8x192xf32>
    %c0_33 = arith.constant 0 : index
    %c0_34 = arith.constant 0 : index
    %57 = vector.load %arg11[%c0_33, %c0_34] : memref<192x192xf32, #tpu.memory_space<vmem>>, vector<192x192xf32>
    %cst_35 = arith.constant dense<0.000000e+00> : vector<8x192xf32>
    %58 = tpu.matmul %56, %57, %cst_35 {dimension_numbers = #tpu.dot_dimension_numbers<[1], [0], [0], [1], [0, 0, 1, 1], [], []>} : vector<8x192xf32>, vector<192x192xf32>, vector<8x192xf32> -> vector<8x192xf32>
    %c0_36 = arith.constant 0 : index
    %c0_37 = arith.constant 0 : index
    %59 = vector.load %arg12[%c0_36, %c0_37] : memref<1x192xf32, #tpu.memory_space<vmem>>, vector<1x192xf32>
    %60 = vector.broadcast %59 : vector<1x192xf32> to vector<8x192xf32>
    %61 = arith.addf %58, %60 : vector<8x192xf32>
    %cst_38 = arith.constant 0.000000e+00 : f32
    %62 = vector.broadcast %cst_38 : f32 to vector<8x192xf32>
    %63 = arith.maximumf %61, %62 : vector<8x192xf32>
    %c0_39 = arith.constant 0 : index
    %c0_40 = arith.constant 0 : index
    %64 = vector.load %arg13[%c0_39, %c0_40] : memref<6x192xf32, #tpu.memory_space<vmem>>, vector<6x192xf32>
    %cst_41 = arith.constant dense<0.000000e+00> : vector<8x192xf32>
    %65 = tpu.matmul %49, %64, %cst_41 {dimension_numbers = #tpu.dot_dimension_numbers<[1], [0], [0], [1], [0, 0, 1, 1], [], []>} : vector<8x6xf32>, vector<6x192xf32>, vector<8x192xf32> -> vector<8x192xf32>
    %66 = arith.mulf %63, %65 : vector<8x192xf32>
    %c0_42 = arith.constant 0 : index
    %c0_43 = arith.constant 0 : index
    %67 = vector.load %arg14[%c0_42, %c0_43] : memref<192x128xf32, #tpu.memory_space<vmem>>, vector<192x128xf32>
    %cst_44 = arith.constant dense<0.000000e+00> : vector<8x128xf32>
    %68 = tpu.matmul %66, %67, %cst_44 {dimension_numbers = #tpu.dot_dimension_numbers<[1], [0], [0], [1], [0, 0, 1, 1], [], []>} : vector<8x192xf32>, vector<192x128xf32>, vector<8x128xf32> -> vector<8x128xf32>
    %c0_45 = arith.constant 0 : index
    %c0_46 = arith.constant 0 : index
    %69 = vector.load %arg15[%c0_45, %c0_46] : memref<1x128xf32, #tpu.memory_space<vmem>>, vector<1x128xf32>
    %70 = vector.broadcast %69 : vector<1x128xf32> to vector<8x128xf32>
    %71 = arith.addf %68, %70 : vector<8x128xf32>
    %cst_47 = arith.constant 9.99999997E-7 : f32
    %72 = vector.broadcast %cst_47 : f32 to vector<8x6xf32>
    %73 = arith.addf %49, %72 : vector<8x6xf32>
    %74 = math.log %73 : vector<8x6xf32>
    %cst_48 = arith.constant dense<0.000000e+00> : vector<8xf32>
    %75 = vector.multi_reduction <add>, %74, %cst_48 [1] : vector<8x6xf32> to vector<8xf32>
    %76 = vector.shape_cast %75 : vector<8xf32> to vector<8x1xf32>
    %cst_49 = arith.constant -0.00333333341 : f32
    %77 = vector.broadcast %cst_49 : f32 to vector<8x1xf32>
    %78 = arith.mulf %77, %76 : vector<8x1xf32>
    %79 = tpu.iota {dimensions = array<i32: 1>} : vector<8x128xi32>
    %c2_i32 = arith.constant 2 : i32
    %80 = vector.broadcast %c2_i32 : i32 to vector<8x128xi32>
    %81 = arith.cmpi eq, %79, %80 : vector<8x128xi32>
    %82 = vector.shape_cast %78 : vector<8x1xf32> to vector<8x1xf32>
    %83 = vector.broadcast %82 : vector<8x1xf32> to vector<8x128xf32>
    %84 = arith.select %81, %83, %71 : vector<8x128xi1>, vector<8x128xf32>
    %c0_50 = arith.constant 0 : index
    %c0_51 = arith.constant 0 : index
    %85 = vector.load %arg16[%c0_50, %c0_51] : memref<8x128xf32, #tpu.memory_space<vmem>>, vector<8x128xf32>
    tpu.vector_store %arg16[%c0_50, %c0_51], %84 {strides = array<i32>} : memref<8x128xf32, #tpu.memory_space<vmem>>, vector<8x128xf32>,
    return
  }
  func.func @transform_0(%arg0: i32) -> (i32, i32) {
    %c0_i32 = arith.constant 0 : i32
    %c0_i32_0 = arith.constant 0 : i32
    return %arg0, %c0_i32 : i32, i32
  }
  func.func @transform_1(%arg0: i32) -> (i32, i32) {
    %c0_i32 = arith.constant 0 : i32
    %c0_i32_0 = arith.constant 0 : i32
    return %arg0, %c0_i32 : i32, i32
  }
  func.func @transform_2(%arg0: i32) -> (i32, i32) {
    %c0_i32 = arith.constant 0 : i32
    %c0_i32_0 = arith.constant 0 : i32
    return %arg0, %c0_i32 : i32, i32
  }
  func.func @transform_3(%arg0: i32) -> (i32, i32) {
    %c0_i32 = arith.constant 0 : i32
    %c0_i32_0 = arith.constant 0 : i32
    %c0_i32_1 = arith.constant 0 : i32
    return %c0_i32, %c0_i32_0 : i32, i32
  }
  func.func @transform_4(%arg0: i32) -> (i32, i32) {
    %c0_i32 = arith.constant 0 : i32
    %c0_i32_0 = arith.constant 0 : i32
    %c0_i32_1 = arith.constant 0 : i32
    return %c0_i32, %c0_i32_0 : i32, i32
  }
  func.func @transform_5(%arg0: i32) -> (i32, i32) {
    %c0_i32 = arith.constant 0 : i32
    %c0_i32_0 = arith.constant 0 : i32
    %c0_i32_1 = arith.constant 0 : i32
    return %c0_i32, %c0_i32_0 : i32, i32
  }
  func.func @transform_6(%arg0: i32) -> (i32, i32) {
    %c0_i32 = arith.constant 0 : i32
    %c0_i32_0 = arith.constant 0 : i32
    %c0_i32_1 = arith.constant 0 : i32
    return %c0_i32, %c0_i32_0 : i32, i32
  }
  func.func @transform_7(%arg0: i32) -> (i32, i32) {
    %c0_i32 = arith.constant 0 : i32
    %c0_i32_0 = arith.constant 0 : i32
    %c0_i32_1 = arith.constant 0 : i32
    return %c0_i32, %c0_i32_0 : i32, i32
  }
  func.func @transform_8(%arg0: i32) -> (i32, i32) {
    %c0_i32 = arith.constant 0 : i32
    %c0_i32_0 = arith.constant 0 : i32
    %c0_i32_1 = arith.constant 0 : i32
    return %c0_i32, %c0_i32_0 : i32, i32
  }
  func.func @transform_9(%arg0: i32) -> (i32, i32) {
    %c0_i32 = arith.constant 0 : i32
    %c0_i32_0 = arith.constant 0 : i32
    %c0_i32_1 = arith.constant 0 : i32
    return %c0_i32, %c0_i32_0 : i32, i32
  }
  func.func @transform_10(%arg0: i32) -> (i32, i32) {
    %c0_i32 = arith.constant 0 : i32
    %c0_i32_0 = arith.constant 0 : i32
    %c0_i32_1 = arith.constant 0 : i32
    return %c0_i32, %c0_i32_0 : i32, i32
  }
  func.func @transform_11(%arg0: i32) -> (i32, i32) {
    %c0_i32 = arith.constant 0 : i32
    %c0_i32_0 = arith.constant 0 : i32
    %c0_i32_1 = arith.constant 0 : i32
    return %c0_i32, %c0_i32_0 : i32, i32
  }
  func.func @transform_12(%arg0: i32) -> (i32, i32) {
    %c0_i32 = arith.constant 0 : i32
    %c0_i32_0 = arith.constant 0 : i32
    %c0_i32_1 = arith.constant 0 : i32
    return %c0_i32, %c0_i32_0 : i32, i32
  }
  func.func @transform_13(%arg0: i32) -> (i32, i32) {
    %c0_i32 = arith.constant 0 : i32
    %c0_i32_0 = arith.constant 0 : i32
    %c0_i32_1 = arith.constant 0 : i32
    return %c0_i32, %c0_i32_0 : i32, i32
  }
  func.func @transform_14(%arg0: i32) -> (i32, i32) {
    %c0_i32 = arith.constant 0 : i32
    %c0_i32_0 = arith.constant 0 : i32
    %c0_i32_1 = arith.constant 0 : i32
    return %c0_i32, %c0_i32_0 : i32, i32
  }
  func.func @transform_15(%arg0: i32) -> (i32, i32) {
    %c0_i32 = arith.constant 0 : i32
    %c0_i32_0 = arith.constant 0 : i32
    return %arg0, %c0_i32 : i32, i32
  }
}

</mosaic_0001>

<llo_original>
// kernel: qnetwork_forward.1
$region0: #{qnetwork_forward.1}
  #allocation0 [shape = 'u32[]', space=smem, size = 0x4, offset = 0x4, fixed_abs, tag = 'smem constant byte address 0x4 - core index']
  #allocation1 [shape = 'u32[72,128]{1,0:T(1,128)}', space=vmem, size = 0x9000, scoped, tag = 'internal scratch']
  %s0 = inlined_call_operand.vmem [shape: f32[8,6], index: 0, kind: input, shape index: {}]
  %s1 = inlined_call_operand.vmem [shape: f32[8,4], index: 1, kind: input, shape index: {}]
  %s2 = inlined_call_operand.vmem [shape: f32[8,10], index: 2, kind: input, shape index: {}]
  %s3 = inlined_call_operand.hbm [shape: f32[6,64], index: 3, kind: input, shape index: {}]
  %s4 = inlined_call_operand.hbm [shape: f32[4,64], index: 4, kind: input, shape index: {}]
  %s5 = inlined_call_operand.hbm [shape: f32[1,64], index: 5, kind: input, shape index: {}]
  %s6 = inlined_call_operand.vmem [shape: f32[64,6], index: 6, kind: input, shape index: {}]
  %s7 = inlined_call_operand.vmem [shape: f32[10,6], index: 7, kind: input, shape index: {}]
  %s8 = inlined_call_operand.vmem [shape: f32[64,192], index: 8, kind: input, shape index: {}]
  %s9 = inlined_call_operand.hbm [shape: f32[1,192], index: 9, kind: input, shape index: {}]
  %s10 = inlined_call_operand.hbm [shape: f32[192,192], index: 10, kind: input, shape index: {}]
  %s11 = inlined_call_operand.hbm [shape: f32[1,192], index: 11, kind: input, shape index: {}]
  %s12 = inlined_call_operand.hbm [shape: f32[6,192], index: 12, kind: input, shape index: {}]
  %s13 = inlined_call_operand.hbm [shape: f32[192,128], index: 13, kind: input, shape index: {}]
  %s14 = inlined_call_operand.hbm [shape: f32[1,128], index: 14, kind: input, shape index: {}]
  %s15 = inlined_call_operand.vmem [shape: f32[8,128], index: 15, kind: output, shape index: {}]
  %s16 = sld [smem:[#allocation0]]
  $region106: #{qnetwork_forward.1} parent=0
    _
  %s18 = ssub.s32 1, %s16
  %s19 = scalar_select 0, %s18, %s16
  $region1: #{qnetwork_forward.1} parent=0
    #allocation2 [shape = 'u8[4096]{0}', space=vmem, size = 0x1000, scoped, tag = 'input window, operand 3, single buffered']
    #allocation3 [shape = 's32[1]{0}', space=sflag, size = 0x4, scoped, tag = 'scoped memory for qnetwork_forward.1']
    #allocation4 [shape = 'u8[2048]{0}', space=vmem, size = 0x800, scoped, tag = 'input window, operand 4, single buffered']
    #allocation5 [shape = 's32[1]{0}', space=sflag, size = 0x4, scoped, tag = 'scoped memory for qnetwork_forward.1']
    #allocation6 [shape = 'u8[512]{0}', space=vmem, size = 0x400, scoped, tag = 'input window, operand 5, single buffered']
    #allocation7 [shape = 'u8[1024]{0}', space=vmem, size = 0x400, scoped, tag = 'input window, operand 9, single buffered']
    #allocation8 [shape = 's32[1]{0}', space=sflag, size = 0x4, scoped, tag = 'scoped memory for qnetwork_forward.1']
    #allocation9 [shape = 'u8[196608]{0}', space=vmem, size = 0x30000, scoped, tag = 'input window, operand 10, single buffered']
    #allocation10 [shape = 'u8[1024]{0}', space=vmem, size = 0x400, scoped, tag = 'input window, operand 11, single buffered']
    #allocation11 [shape = 's32[1]{0}', space=sflag, size = 0x4, scoped, tag = 'scoped memory for qnetwork_forward.1']
    #allocation12 [shape = 'u8[8192]{0}', space=vmem, size = 0x2000, scoped, tag = 'input window, operand 12, single buffered']
    #allocation13 [shape = 'u8[98304]{0}', space=vmem, size = 0x18000, scoped, tag = 'input window, operand 13, single buffered']
    #allocation14 [shape = 's32[1]{0}', space=sflag, size = 0x4, scoped, tag = 'scoped memory for qnetwork_forward.1']
    #allocation15 [shape = 'u8[512]{0}', space=vmem, size = 0x400, scoped, tag = 'input window, operand 14, single buffered']
    %20 = vsyncpa [#allocation3], 0
    %21 = vsyncpa [#allocation5], 0
    %22 = vsyncpa [#allocation8], 0
    %23 = vsyncpa [#allocation11], 0
    %24 = vsyncpa [#allocation14], 0
    // Predicated region
    $region2: #{qnetwork_forward.1} parent=1 // pred_check
      _
    $region3: #{qnetwork_forward.1} parent=1 // pred_check_branch
      %26 = sbr.rel (0) target = $region5
    $region4: #{qnetwork_forward.1} parent=1 // pred_region
      _
    $region5: #{qnetwork_forward.1} parent=1 // pred_fallthru
      _
    // Predicated region
    $region6: #{qnetwork_forward.1} parent=1 // pred_check
      _
    $region7: #{qnetwork_forward.1} parent=1 // pred_check_branch
      %28 = sbr.rel (0) target = $region9
    $region8: #{qnetwork_forward.1} parent=1 // pred_region
      _
    $region9: #{qnetwork_forward.1} parent=1 // pred_fallthru
      _
    // Predicated region
    $region10: #{qnetwork_forward.1} parent=1 // pred_check
      _
    $region11: #{qnetwork_forward.1} parent=1 // pred_check_branch
      %30 = sbr.rel (0) target = $region13
    $region12: #{qnetwork_forward.1} parent=1 // pred_region
      _
    $region13: #{qnetwork_forward.1} parent=1 // pred_fallthru
      _
    // Predicated region
    $region14: #{qnetwork_forward.1} parent=1 // pred_check
      _
    $region15: #{qnetwork_forward.1} parent=1 // pred_check_branch
      %32 = sbr.rel (0) target = $region17
    $region16: #{qnetwork_forward.1} parent=1 // pred_region
      %34 = vsyncadd [#allocation3], 0
      %s36 = sshll.u32 %s3, 4
      %s37 = int_to_ptr.hbm [resolvable:$true] %s36
      %s38 = sshll.u32 [#allocation2], 4
      %s39 = int_to_ptr.vmem [resolvable:$true] %s38
      %41 = dma.hbm_to_vmem [thread:$0]  %s37, 128, %s39, [#allocation3]
    $region17: #{qnetwork_forward.1} parent=1 // pred_fallthru
      _
    // Predicated region
    $region18: #{qnetwork_forward.1} parent=1 // pred_check
      _
    $region19: #{qnetwork_forward.1} parent=1 // pred_check_branch
      %43 = sbr.rel (0) target = $region21
    $region20: #{qnetwork_forward.1} parent=1 // pred_region
      %45 = vsyncadd [#allocation5], 0
      %s47 = sshll.u32 %s4, 4
      %s48 = int_to_ptr.hbm [resolvable:$true] %s47
      %s49 = sshll.u32 [#allocation4], 4
      %s50 = int_to_ptr.vmem [resolvable:$true] %s49
      %52 = dma.hbm_to_vmem [thread:$0]  %s48, 64, %s50, [#allocation5]
    $region21: #{qnetwork_forward.1} parent=1 // pred_fallthru
      _
    // Predicated region
    $region22: #{qnetwork_forward.1} parent=1 // pred_check
      _
    $region23: #{qnetwork_forward.1} parent=1 // pred_check_branch
      %54 = sbr.rel (0) target = $region25
    $region24: #{qnetwork_forward.1} parent=1 // pred_region
      %56 = vsyncadd [#allocation5], 0
      %s58 = sshll.u32 %s5, 4
      %s59 = int_to_ptr.hbm [resolvable:$true] %s58
      %s60 = sshll.u32 [#allocation6], 4
      %s61 = int_to_ptr.vmem [resolvable:$true] %s60
      %63 = dma.hbm_to_vmem [thread:$0]  %s59, 16, %s61, [#allocation5]
    $region25: #{qnetwork_forward.1} parent=1 // pred_fallthru
      _
    // Predicated region
    $region26: #{qnetwork_forward.1} parent=1 // pred_check
      _
    $region27: #{qnetwork_forward.1} parent=1 // pred_check_branch
      %65 = sbr.rel (0) target = $region29
    $region28: #{qnetwork_forward.1} parent=1 // pred_region
      _
    $region29: #{qnetwork_forward.1} parent=1 // pred_fallthru
      _
    // Predicated region
    $region30: #{qnetwork_forward.1} parent=1 // pred_check
      _
    $region31: #{qnetwork_forward.1} parent=1 // pred_check_branch
      %67 = sbr.rel (0) target = $region33
    $region32: #{qnetwork_forward.1} parent=1 // pred_region
      _
    $region33: #{qnetwork_forward.1} parent=1 // pred_fallthru
      _
    // Predicated region
    $region34: #{qnetwork_forward.1} parent=1 // pred_check
      _
    $region35: #{qnetwork_forward.1} parent=1 // pred_check_branch
      %69 = sbr.rel (0) target = $region37
    $region36: #{qnetwork_forward.1} parent=1 // pred_region
      _
    $region37: #{qnetwork_forward.1} parent=1 // pred_fallthru
      _
    // Predicated region
    $region38: #{qnetwork_forward.1} parent=1 // pred_check
      _
    $region39: #{qnetwork_forward.1} parent=1 // pred_check_branch
      %71 = sbr.rel (0) target = $region41
    $region40: #{qnetwork_forward.1} parent=1 // pred_region
      %73 = vsyncadd [#allocation8], 0
      %s75 = sshll.u32 %s9, 4
      %s76 = int_to_ptr.hbm [resolvable:$true] %s75
      %s77 = sshll.u32 [#allocation7], 4
      %s78 = int_to_ptr.vmem [resolvable:$true] %s77
      %80 = dma.hbm_to_vmem [thread:$0]  %s76, 32, %s78, [#allocation8]
    $region41: #{qnetwork_forward.1} parent=1 // pred_fallthru
      _
    // Predicated region
    $region42: #{qnetwork_forward.1} parent=1 // pred_check
      _
    $region43: #{qnetwork_forward.1} parent=1 // pred_check_branch
      %82 = sbr.rel (0) target = $region45
    $region44: #{qnetwork_forward.1} parent=1 // pred_region
      %84 = vsyncadd [#allocation8], 0
      %s85 = sshll.u32 %s10, 4
      %s86 = int_to_ptr.hbm [resolvable:$true] %s85
      %s87 = sshll.u32 [#allocation9], 4
      %s88 = int_to_ptr.vmem [resolvable:$true] %s87
      %93 = dma.hbm_to_vmem [thread:$0]  %s86, 6144, %s88, [#allocation8], 256, 256, 16
    $region45: #{qnetwork_forward.1} parent=1 // pred_fallthru
      _
    // Predicated region
    $region46: #{qnetwork_forward.1} parent=1 // pred_check
      _
    $region47: #{qnetwork_forward.1} parent=1 // pred_check_branch
      %95 = sbr.rel (0) target = $region49
    $region48: #{qnetwork_forward.1} parent=1 // pred_region
      %97 = vsyncadd [#allocation11], 0
      %s99 = sshll.u32 %s11, 4
      %s100 = int_to_ptr.hbm [resolvable:$true] %s99
      %s101 = sshll.u32 [#allocation10], 4
      %s102 = int_to_ptr.vmem [resolvable:$true] %s101
      %104 = dma.hbm_to_vmem [thread:$0]  %s100, 32, %s102, [#allocation11]
    $region49: #{qnetwork_forward.1} parent=1 // pred_fallthru
      _
    // Predicated region
    $region50: #{qnetwork_forward.1} parent=1 // pred_check
      _
    $region51: #{qnetwork_forward.1} parent=1 // pred_check_branch
      %106 = sbr.rel (0) target = $region53
    $region52: #{qnetwork_forward.1} parent=1 // pred_region
      %108 = vsyncadd [#allocation11], 0
      %s110 = sshll.u32 %s12, 4
      %s111 = int_to_ptr.hbm [resolvable:$true] %s110
      %s112 = sshll.u32 [#allocation12], 4
      %s113 = int_to_ptr.vmem [resolvable:$true] %s112
      %115 = dma.hbm_to_vmem [thread:$0]  %s111, 256, %s113, [#allocation11]
    $region53: #{qnetwork_forward.1} parent=1 // pred_fallthru
      _
    // Predicated region
    $region54: #{qnetwork_forward.1} parent=1 // pred_check
      _
    $region55: #{qnetwork_forward.1} parent=1 // pred_check_branch
      %117 = sbr.rel (0) target = $region57
    $region56: #{qnetwork_forward.1} parent=1 // pred_region
      %119 = vsyncadd [#allocation14], 0
      %s120 = sshll.u32 %s13, 4
      %s121 = int_to_ptr.hbm [resolvable:$true] %s120
      %s122 = sshll.u32 [#allocation13], 4
      %s123 = int_to_ptr.vmem [resolvable:$true] %s122
      %128 = dma.hbm_to_vmem [thread:$0]  %s121, 3072, %s123, [#allocation14], 128, 128, 8
    $region57: #{qnetwork_forward.1} parent=1 // pred_fallthru
      _
    // Predicated region
    $region58: #{qnetwork_forward.1} parent=1 // pred_check
      _
    $region59: #{qnetwork_forward.1} parent=1 // pred_check_branch
      %130 = sbr.rel (0) target = $region61
    $region60: #{qnetwork_forward.1} parent=1 // pred_region
      %132 = vsyncadd [#allocation14], 0
      %s134 = sshll.u32 %s14, 4
      %s135 = int_to_ptr.hbm [resolvable:$true] %s134
      %s136 = sshll.u32 [#allocation15], 4
      %s137 = int_to_ptr.vmem [resolvable:$true] %s136
      %139 = dma.hbm_to_vmem [thread:$0]  %s135, 16, %s137, [#allocation14]
    $region61: #{qnetwork_forward.1} parent=1 // pred_fallthru
      _
    // Predicated region
    $region62: #{qnetwork_forward.1} parent=1 // pred_check
      _
    $region63: #{qnetwork_forward.1} parent=1 // pred_check_branch
      %141 = sbr.rel (0) target = $region65
    $region64: #{qnetwork_forward.1} parent=1 // pred_region
      %143 = dma.done [#allocation3], 128
    $region65: #{qnetwork_forward.1} parent=1 // pred_fallthru
      _
    // Predicated region
    $region66: #{qnetwork_forward.1} parent=1 // pred_check
      _
    $region67: #{qnetwork_forward.1} parent=1 // pred_check_branch
      %145 = sbr.rel (0) target = $region69
    $region68: #{qnetwork_forward.1} parent=1 // pred_region
      %147 = dma.done [#allocation5], 64
    $region69: #{qnetwork_forward.1} parent=1 // pred_fallthru
      _
    // Predicated region
    $region70: #{qnetwork_forward.1} parent=1 // pred_check
      _
    $region71: #{qnetwork_forward.1} parent=1 // pred_check_branch
      %149 = sbr.rel (0) target = $region73
    $region72: #{qnetwork_forward.1} parent=1 // pred_region
      %151 = dma.done [#allocation5], 16
    $region73: #{qnetwork_forward.1} parent=1 // pred_fallthru
      _
    // Predicated region
    $region74: #{qnetwork_forward.1} parent=1 // pred_check
      _
    $region75: #{qnetwork_forward.1} parent=1 // pred_check_branch
      %153 = sbr.rel (0) target = $region77
    $region76: #{qnetwork_forward.1} parent=1 // pred_region
      %155 = dma.done [#allocation8], 32
    $region77: #{qnetwork_forward.1} parent=1 // pred_fallthru
      _
    // Predicated region
    $region78: #{qnetwork_forward.1} parent=1 // pred_check
      _
    $region79: #{qnetwork_forward.1} parent=1 // pred_check_branch
      %157 = sbr.rel (0) target = $region81
    $region80: #{qnetwork_forward.1} parent=1 // pred_region
      %159 = dma.done [#allocation8], 6144
    $region81: #{qnetwork_forward.1} parent=1 // pred_fallthru
      _
    // Predicated region
    $region82: #{qnetwork_forward.1} parent=1 // pred_check
      _
    $region83: #{qnetwork_forward.1} parent=1 // pred_check_branch
      %161 = sbr.rel (0) target = $region85
    $region84: #{qnetwork_forward.1} parent=1 // pred_region
      %163 = dma.done [#allocation11], 32
    $region85: #{qnetwork_forward.1} parent=1 // pred_fallthru
      _
    // Predicated region
    $region86: #{qnetwork_forward.1} parent=1 // pred_check
      _
    $region87: #{qnetwork_forward.1} parent=1 // pred_check_branch
      %165 = sbr.rel (0) target = $region89
    $region88: #{qnetwork_forward.1} parent=1 // pred_region
      %167 = dma.done [#allocation11], 256
    $region89: #{qnetwork_forward.1} parent=1 // pred_fallthru
      _
    // Predicated region
    $region90: #{qnetwork_forward.1} parent=1 // pred_check
      _
    $region91: #{qnetwork_forward.1} parent=1 // pred_check_branch
      %169 = sbr.rel (0) target = $region93
    $region92: #{qnetwork_forward.1} parent=1 // pred_region
      %171 = dma.done [#allocation14], 3072
    $region93: #{qnetwork_forward.1} parent=1 // pred_fallthru
      _
    // Predicated region
    $region94: #{qnetwork_forward.1} parent=1 // pred_check
      _
    $region95: #{qnetwork_forward.1} parent=1 // pred_check_branch
      %173 = sbr.rel (0) target = $region97
    $region96: #{qnetwork_forward.1} parent=1 // pred_region
      %175 = dma.done [#allocation14], 16
    $region97: #{qnetwork_forward.1} parent=1 // pred_fallthru
      _
    %v176 = vld [vmem:[%s0] sm:$0xff]
    %v177 = vld [vmem:[#allocation2] sm:$0x3f]
    %v178 = vld [vmem:[%s1] sm:$0xff]
    %v179 = vld [vmem:[#allocation4] sm:$0xf]
    %vm180 = vcmask 31744
    %v182 = vsel %vm180, %v178, 0
    %vm184 = vcmask 1043456
    %v186 = vsel %vm184, %v179, 0
    %188 = vmatpush.msra.mxu0 0.0
    %189 = vmatpush.msra.mxu0 0.0
    %190 = vmatpush.msra.mxu0 0.0
    %191 = vmatpush.msra.mxu0 0.0
    %192 = vmatpush.msra.mxu0 0.0
    %193 = vmatpush.msra.mxu0 0.0
    %194 = vmatpush.msra.mxu0 0.0
    %195 = vmatpush.msra.mxu0 0.0
    %196 = vmatpush.msra.mxu0 0.0
    %197 = vmatpush.msra.mxu0 0.0
    %198 = vmatpush.msra.mxu0 0.0
    %199 = vmatpush.msra.mxu0 0.0
    %200 = vmatpush.msra.mxu0 0.0
    %201 = vmatpush.msra.mxu0 0.0
    %202 = vmatpush.msra.mxu0 0.0
    %203 = vmatpush.msra.mxu0 %v186
    %204 = vmatmul.f32.gmra.mxu0 %v182
    %v205 = vpop.f32.mrf.mxu0
    %v206 = vadd.f32 0.0, %v205
    %207 = vdwg.mxu0
    %vm208 = vcmask 48128
    %v210 = vsel %vm208, %v176, 0
    %vm212 = vcmask 1045504
    %v214 = vsel %vm212, %v177, 0
    %216 = vmatpush.msra.mxu0 0.0
    %217 = vmatpush.msra.mxu0 0.0
    %218 = vmatpush.msra.mxu0 0.0
    %219 = vmatpush.msra.mxu0 0.0
    %220 = vmatpush.msra.mxu0 0.0
    %221 = vmatpush.msra.mxu0 0.0
    %222 = vmatpush.msra.mxu0 0.0
    %223 = vmatpush.msra.mxu0 0.0
    %224 = vmatpush.msra.mxu0 0.0
    %225 = vmatpush.msra.mxu0 0.0
    %226 = vmatpush.msra.mxu0 0.0
    %227 = vmatpush.msra.mxu0 0.0
    %228 = vmatpush.msra.mxu0 0.0
    %229 = vmatpush.msra.mxu0 0.0
    %230 = vmatpush.msra.mxu0 0.0
    %231 = vmatpush.msra.mxu0 %v214
    %232 = vmatmul.f32.gmra.mxu0 %v210
    %v233 = vpop.f32.mrf.mxu0
    %v234 = vadd.f32 %v206, %v233
    %235 = vdwg.mxu0
    %v236 = vld [vmem:[#allocation6] sm:$0x1]
    %v238 = vperm.slane %v236, 0
    %v240 = vadd.f32 %v234, %v238
    %v241 = vmax.f32 %v240, 0.0
    %v242 = vld [vmem:[%s6] sm:$0xff]
    %v243 = vld [vmem:[%s6 + $0x8] sm:$0xff]
    %v244 = vld [vmem:[%s6 + $0x10] sm:$0xff]
    %v245 = vld [vmem:[%s6 + $0x18] sm:$0xff]
    %v246 = vld [vmem:[%s6 + $0x20] sm:$0xff]
    %v247 = vld [vmem:[%s6 + $0x28] sm:$0xff]
    %v248 = vld [vmem:[%s6 + $0x30] sm:$0xff]
    %v249 = vld [vmem:[%s6 + $0x38] sm:$0xff]
    %v250 = vld [vmem:[%s2] sm:$0xff]
    %v251 = vld [vmem:[%s7] sm:$0xff]
    %v252 = vld [vmem:[%s7 + $0x8] sm:$0x3]
    %vm253 = vcmask 80896
    %v255 = vsel %vm253, %v250, 0
    %vm257 = vcmask 1041408
    %v259 = vsel %vm257, %v252, 0
    %261 = vmatpush.msra.mxu0 0.0
    %262 = vmatpush.msra.mxu0 0.0
    %263 = vmatpush.msra.mxu0 0.0
    %264 = vmatpush.msra.mxu0 0.0
    %265 = vmatpush.msra.mxu0 0.0
    %266 = vmatpush.msra.mxu0 0.0
    %267 = vmatpush.msra.mxu0 0.0
    %268 = vmatpush.msra.mxu0 0.0
    %269 = vmatpush.msra.mxu0 0.0
    %270 = vmatpush.msra.mxu0 0.0
    %271 = vmatpush.msra.mxu0 0.0
    %272 = vmatpush.msra.mxu0 0.0
    %273 = vmatpush.msra.mxu0 0.0
    %274 = vmatpush.msra.mxu0 0.0
    %275 = vmatpush.msra.mxu0 %v259
    %276 = vmatpush.msra.mxu0 %v251
    %277 = vmatmul.f32.gmra.mxu0 %v255
    %v278 = vpop.f32.mrf.mxu0
    %v279 = vadd.f32 0.0, %v278
    %280 = vdwg.mxu0
    %vm281 = vcmask 523264
    %v283 = vsel %vm281, %v241, 0
    %285 = vmatpush.msra.mxu0 0.0
    %286 = vmatpush.msra.mxu0 0.0
    %287 = vmatpush.msra.mxu0 0.0
    %288 = vmatpush.msra.mxu0 0.0
    %289 = vmatpush.msra.mxu0 0.0
    %290 = vmatpush.msra.mxu0 0.0
    %291 = vmatpush.msra.mxu0 0.0
    %292 = vmatpush.msra.mxu0 0.0
    %293 = vmatpush.msra.mxu0 %v249
    %294 = vmatpush.msra.mxu0 %v248
    %295 = vmatpush.msra.mxu0 %v247
    %296 = vmatpush.msra.mxu0 %v246
    %297 = vmatpush.msra.mxu0 %v245
    %298 = vmatpush.msra.mxu0 %v244
    %299 = vmatpush.msra.mxu0 %v243
    %300 = vmatpush.msra.mxu0 %v242
    %301 = vmatmul.f32.gmra.mxu0 %v283
    %v302 = vpop.f32.mrf.mxu0
    %v303 = vadd.f32 %v279, %v302
    %304 = vdwg.mxu0
    %v305 = vlaneseq
    %v306 = vand.u32 %v305, 127
    %vm307 = vcmp.ge.s32.totalorder %v306, 3
    %v308 = vsel %vm307, -inf, %v303
    %v309 = vsel %vm208, %v308, -inf
    %310 = vmax.xlane.f32.xlu0 %v309
    %v311 = vpop.xlane.xlu0 %310
    %v312 = vsel %vm307, %v303, -inf
    %v313 = vsel %vm208, %v312, -inf
    %314 = vmax.xlane.f32.xlu0 %v313
    %v315 = vpop.xlane.xlu0 %314
    %v316 = vsel %vm307, %v315, %v311
    %v317 = vsub.f32 %v303, %v316
    %v318 = vmul.f32 %v317, 1.442695
    %v319 = vpow.pop %v318
    %v320 = vsel %vm307, 0.0, %v319
    %v321 = vsel %vm208, %v320, 0.0
    %322 = vadd.xlane.f32.xlu0 %v321
    %v323 = vpop.xlane.xlu0 %322
    %v324 = vsel %vm307, %v319, 0.0
    %v325 = vsel %vm208, %v324, 0.0
    %326 = vadd.xlane.f32.xlu0 %v325
    %v327 = vpop.xlane.xlu0 %326
    %v328 = vsel %vm307, %v327, %v323
    %v329 = vrcp.pop %v328
    %v330 = vmul.f32 %v328, %v329
    %v331 = vsub.f32 1.0, %v330
    %v332 = vmul.f32 %v329, %v331
    %v333 = vadd.f32 %v329, %v332
    %vm334 = vweird.f32 %v328
    %vm335 = vweird.f32 %v329
    %vm336 = vmor %vm334, %vm335
    %v337 = vsel %vm336, %v329, %v333
    %v338 = vand.u32 2147483647, %v328
    %vm339 = vcmp.eq.f32.partialorder %v338, 8.507059e+37
    %v340 = vand.u32 %v328, 2147483648
    %v341 = vor.u32 1.1754944e-38, %v340
    %v342 = vsel %vm339, %v341, %v337
    %v343 = vmul.f32 %v319, %v342
    %v344 = vld [vmem:[%s8] sm:$0xff]
    %v345 = vld [vmem:[%s8 + $0x8] sm:$0xff]
    %v346 = vld [vmem:[%s8 + $0x10] sm:$0xff]
    %v347 = vld [vmem:[%s8 + $0x18] sm:$0xff]
    %v348 = vld [vmem:[%s8 + $0x20] sm:$0xff]
    %v349 = vld [vmem:[%s8 + $0x28] sm:$0xff]
    %v350 = vld [vmem:[%s8 + $0x30] sm:$0xff]
    %v351 = vld [vmem:[%s8 + $0x38] sm:$0xff]
    %v352 = vld [vmem:[%s8 + $0x40] sm:$0xff]
    %v353 = vld [vmem:[%s8 + $0x48] sm:$0xff]
    %v354 = vld [vmem:[%s8 + $0x50] sm:$0xff]
    %v355 = vld [vmem:[%s8 + $0x58] sm:$0xff]
    %v356 = vld [vmem:[%s8 + $0x60] sm:$0xff]
    %v357 = vld [vmem:[%s8 + $0x68] sm:$0xff]
    %v358 = vld [vmem:[%s8 + $0x70] sm:$0xff]
    %v359 = vld [vmem:[%s8 + $0x78] sm:$0xff]
    %v360 = vld [vmem:[#allocation7] sm:$0x3]
    %v362 = vperm.slane %v360, 0
    %v363 = vperm.slane %v360, 1
    %366 = vmatpush.msra.mxu0 0.0
    %367 = vmatpush.msra.mxu0 0.0
    %368 = vmatpush.msra.mxu0 0.0
    %369 = vmatpush.msra.mxu0 0.0
    %370 = vmatpush.msra.mxu0 0.0
    %371 = vmatpush.msra.mxu0 0.0
    %372 = vmatpush.msra.mxu0 0.0
    %373 = vmatpush.msra.mxu0 0.0
    %374 = vmatpush.msra.mxu0 %v358
    %375 = vmatpush.msra.mxu0 %v356
    %376 = vmatpush.msra.mxu0 %v354
    %377 = vmatpush.msra.mxu0 %v352
    %378 = vmatpush.msra.mxu0 %v350
    %379 = vmatpush.msra.mxu0 %v348
    %380 = vmatpush.msra.mxu0 %v346
    %381 = vmatpush.msra.mxu0 %v344
    %382 = vmatmul.f32.gmra.mxu0 %v283
    %v383 = vpop.f32.mrf.mxu0
    %v384 = vadd.f32 %v362, %v383
    %385 = vdwg.mxu0
    %386 = vmatpush.msra.mxu0 0.0
    %387 = vmatpush.msra.mxu0 0.0
    %388 = vmatpush.msra.mxu0 0.0
    %389 = vmatpush.msra.mxu0 0.0
    %390 = vmatpush.msra.mxu0 0.0
    %391 = vmatpush.msra.mxu0 0.0
    %392 = vmatpush.msra.mxu0 0.0
    %393 = vmatpush.msra.mxu0 0.0
    %394 = vmatpush.msra.mxu0 %v359
    %395 = vmatpush.msra.mxu0 %v357
    %396 = vmatpush.msra.mxu0 %v355
    %397 = vmatpush.msra.mxu0 %v353
    %398 = vmatpush.msra.mxu0 %v351
    %399 = vmatpush.msra.mxu0 %v349
    %400 = vmatpush.msra.mxu0 %v347
    %401 = vmatpush.msra.mxu0 %v345
    %402 = vmatmul.f32.gmra.mxu0 %v283
    %v403 = vpop.f32.mrf.mxu0
    %v404 = vadd.f32 %v363, %v403
    %405 = vdwg.mxu0
    %v406 = vmax.f32 %v384, 0.0
    %v407 = vmax.f32 %v404, 0.0
    %v408 = vld [vmem:[#allocation9] sm:$0xff]
    %v409 = vld [vmem:[#allocation9 + $0x8] sm:$0xff]
    %v410 = vld [vmem:[#allocation9 + $0x10] sm:$0xff]
    %v411 = vld [vmem:[#allocation9 + $0x18] sm:$0xff]
    %v412 = vld [vmem:[#allocation9 + $0x20] sm:$0xff]
    %v413 = vld [vmem:[#allocation9 + $0x28] sm:$0xff]
    %v414 = vld [vmem:[#allocation9 + $0x30] sm:$0xff]
    %v415 = vld [vmem:[#allocation9 + $0x38] sm:$0xff]
    %v416 = vld [vmem:[#allocation9 + $0x40] sm:$0xff]
    %v417 = vld [vmem:[#allocation9 + $0x48] sm:$0xff]
    %v418 = vld [vmem:[#allocation9 + $0x50] sm:$0xff]
    %v419 = vld [vmem:[#allocation9 + $0x58] sm:$0xff]
    %v420 = vld [vmem:[#allocation9 + $0x60] sm:$0xff]
    %v421 = vld [vmem:[#allocation9 + $0x68] sm:$0xff]
    %v422 = vld [vmem:[#allocation9 + $0x70] sm:$0xff]
    %v423 = vld [vmem:[#allocation9 + $0x78] sm:$0xff]
    %v424 = vld [vmem:[#allocation9 + $0x80] sm:$0xff]
    %v425 = vld [vmem:[#allocation9 + $0x88] sm:$0xff]
    %v426 = vld [vmem:[#allocation9 + $0x90] sm:$0xff]
    %v427 = vld [vmem:[#allocation9 + $0x98] sm:$0xff]
    %v428 = vld [vmem:[#allocation9 + $0xa0] sm:$0xff]
    %v429 = vld [vmem:[#allocation9 + $0xa8] sm:$0xff]
    %v430 = vld [vmem:[#allocation9 + $0xb0] sm:$0xff]
    %v431 = vld [vmem:[#allocation9 + $0xb8] sm:$0xff]
    %v432 = vld [vmem:[#allocation9 + $0xc0] sm:$0xff]
    %v433 = vld [vmem:[#allocation9 + $0xc8] sm:$0xff]
    %v434 = vld [vmem:[#allocation9 + $0xd0] sm:$0xff]
    %v435 = vld [vmem:[#allocation9 + $0xd8] sm:$0xff]
    %v436 = vld [vmem:[#allocation9 + $0xe0] sm:$0xff]
    %v437 = vld [vmem:[#allocation9 + $0xe8] sm:$0xff]
    %v438 = vld [vmem:[#allocation9 + $0xf0] sm:$0xff]
    %v439 = vld [vmem:[#allocation9 + $0xf8] sm:$0xff]
    %v440 = vld [vmem:[#allocation9 + $0x100] sm:$0xff]
    %v441 = vld [vmem:[#allocation9 + $0x108] sm:$0xff]
    %v442 = vld [vmem:[#allocation9 + $0x110] sm:$0xff]
    %v443 = vld [vmem:[#allocation9 + $0x118] sm:$0xff]
    %v444 = vld [vmem:[#allocation9 + $0x120] sm:$0xff]
    %v445 = vld [vmem:[#allocation9 + $0x128] sm:$0xff]
    %v446 = vld [vmem:[#allocation9 + $0x130] sm:$0xff]
    %v447 = vld [vmem:[#allocation9 + $0x138] sm:$0xff]
    %v448 = vld [vmem:[#allocation9 + $0x140] sm:$0xff]
    %v449 = vld [vmem:[#allocation9 + $0x148] sm:$0xff]
    %v450 = vld [vmem:[#allocation9 + $0x150] sm:$0xff]
    %v451 = vld [vmem:[#allocation9 + $0x158] sm:$0xff]
    %v452 = vld [vmem:[#allocation9 + $0x160] sm:$0xff]
    %v453 = vld [vmem:[#allocation9 + $0x168] sm:$0xff]
    %v454 = vld [vmem:[#allocation9 + $0x170] sm:$0xff]
    %v455 = vld [vmem:[#allocation9 + $0x178] sm:$0xff]
    %v456 = vld [vmem:[#allocation10] sm:$0x3]
    %v458 = vperm.slane %v456, 0
    %v459 = vperm.slane %v456, 1
    %v463 = vsel %vm281, %v407, 0
    %465 = vmatpush.msra.mxu0 %v438
    %466 = vmatpush.msra.mxu0 %v436
    %467 = vmatpush.msra.mxu0 %v434
    %468 = vmatpush.msra.mxu0 %v432
    %469 = vmatpush.msra.mxu0 %v430
    %470 = vmatpush.msra.mxu0 %v428
    %471 = vmatpush.msra.mxu0 %v426
    %472 = vmatpush.msra.mxu0 %v424
    %473 = vmatpush.msra.mxu0 %v422
    %474 = vmatpush.msra.mxu0 %v420
    %475 = vmatpush.msra.mxu0 %v418
    %476 = vmatpush.msra.mxu0 %v416
    %477 = vmatpush.msra.mxu0 %v414
    %478 = vmatpush.msra.mxu0 %v412
    %479 = vmatpush.msra.mxu0 %v410
    %480 = vmatpush.msra.mxu0 %v408
    %481 = vmatmul.f32.gmra.mxu0 %v406
    %v482 = vpop.f32.mrf.mxu0
    %v483 = vadd.f32 %v458, %v482
    %484 = vdwg.mxu0
    %485 = vmatpush.msra.mxu0 0.0
    %486 = vmatpush.msra.mxu0 0.0
    %487 = vmatpush.msra.mxu0 0.0
    %488 = vmatpush.msra.mxu0 0.0
    %489 = vmatpush.msra.mxu0 0.0
    %490 = vmatpush.msra.mxu0 0.0
    %491 = vmatpush.msra.mxu0 0.0
    %492 = vmatpush.msra.mxu0 0.0
    %493 = vmatpush.msra.mxu0 %v454
    %494 = vmatpush.msra.mxu0 %v452
    %495 = vmatpush.msra.mxu0 %v450
    %496 = vmatpush.msra.mxu0 %v448
    %497 = vmatpush.msra.mxu0 %v446
    %498 = vmatpush.msra.mxu0 %v444
    %499 = vmatpush.msra.mxu0 %v442
    %500 = vmatpush.msra.mxu0 %v440
    %501 = vmatmul.f32.gmra.mxu0 %v463
    %v502 = vpop.f32.mrf.mxu0
    %v503 = vadd.f32 %v483, %v502
    %504 = vdwg.mxu0
    %505 = vmatpush.msra.mxu0 %v439
    %506 = vmatpush.msra.mxu0 %v437
    %507 = vmatpush.msra.mxu0 %v435
    %508 = vmatpush.msra.mxu0 %v433
    %509 = vmatpush.msra.mxu0 %v431
    %510 = vmatpush.msra.mxu0 %v429
    %511 = vmatpush.msra.mxu0 %v427
    %512 = vmatpush.msra.mxu0 %v425
    %513 = vmatpush.msra.mxu0 %v423
    %514 = vmatpush.msra.mxu0 %v421
    %515 = vmatpush.msra.mxu0 %v419
    %516 = vmatpush.msra.mxu0 %v417
    %517 = vmatpush.msra.mxu0 %v415
    %518 = vmatpush.msra.mxu0 %v413
    %519 = vmatpush.msra.mxu0 %v411
    %520 = vmatpush.msra.mxu0 %v409
    %521 = vmatmul.f32.gmra.mxu0 %v406
    %v522 = vpop.f32.mrf.mxu0
    %v523 = vadd.f32 %v459, %v522
    %524 = vdwg.mxu0
    %525 = vmatpush.msra.mxu0 0.0
    %526 = vmatpush.msra.mxu0 0.0
    %527 = vmatpush.msra.mxu0 0.0
    %528 = vmatpush.msra.mxu0 0.0
    %529 = vmatpush.msra.mxu0 0.0
    %530 = vmatpush.msra.mxu0 0.0
    %531 = vmatpush.msra.mxu0 0.0
    %532 = vmatpush.msra.mxu0 0.0
    %533 = vmatpush.msra.mxu0 %v455
    %534 = vmatpush.msra.mxu0 %v453
    %535 = vmatpush.msra.mxu0 %v451
    %536 = vmatpush.msra.mxu0 %v449
    %537 = vmatpush.msra.mxu0 %v447
    %538 = vmatpush.msra.mxu0 %v445
    %539 = vmatpush.msra.mxu0 %v443
    %540 = vmatpush.msra.mxu0 %v441
    %541 = vmatmul.f32.gmra.mxu0 %v463
    %v542 = vpop.f32.mrf.mxu0
    %v543 = vadd.f32 %v523, %v542
    %544 = vdwg.mxu0
    %v545 = vmax.f32 %v503, 0.0
    %v546 = vmax.f32 %v543, 0.0
    %v547 = vld [vmem:[#allocation12] sm:$0x3f]
    %v548 = vld [vmem:[#allocation12 + $0x8] sm:$0x3f]
    %v550 = vsel %vm208, %v343, 0
    %v553 = vsel %vm212, %v547, 0
    %v556 = vsel %vm212, %v548, 0
    %558 = vmatpush.msra.mxu0 0.0
    %559 = vmatpush.msra.mxu0 0.0
    %560 = vmatpush.msra.mxu0 0.0
    %561 = vmatpush.msra.mxu0 0.0
    %562 = vmatpush.msra.mxu0 0.0
    %563 = vmatpush.msra.mxu0 0.0
    %564 = vmatpush.msra.mxu0 0.0
    %565 = vmatpush.msra.mxu0 0.0
    %566 = vmatpush.msra.mxu0 0.0
    %567 = vmatpush.msra.mxu0 0.0
    %568 = vmatpush.msra.mxu0 0.0
    %569 = vmatpush.msra.mxu0 0.0
    %570 = vmatpush.msra.mxu0 0.0
    %571 = vmatpush.msra.mxu0 0.0
    %572 = vmatpush.msra.mxu0 0.0
    %573 = vmatpush.msra.mxu0 %v553
    %574 = vmatmul.f32.gmra.mxu0 %v550
    %v575 = vpop.f32.mrf.mxu0
    %v576 = vadd.f32 0.0, %v575
    %577 = vdwg.mxu0
    %578 = vmatpush.msra.mxu0 0.0
    %579 = vmatpush.msra.mxu0 0.0
    %580 = vmatpush.msra.mxu0 0.0
    %581 = vmatpush.msra.mxu0 0.0
    %582 = vmatpush.msra.mxu0 0.0
    %583 = vmatpush.msra.mxu0 0.0
    %584 = vmatpush.msra.mxu0 0.0
    %585 = vmatpush.msra.mxu0 0.0
    %586 = vmatpush.msra.mxu0 0.0
    %587 = vmatpush.msra.mxu0 0.0
    %588 = vmatpush.msra.mxu0 0.0
    %589 = vmatpush.msra.mxu0 0.0
    %590 = vmatpush.msra.mxu0 0.0
    %591 = vmatpush.msra.mxu0 0.0
    %592 = vmatpush.msra.mxu0 0.0
    %593 = vmatpush.msra.mxu0 %v556
    %594 = vmatmul.f32.gmra.mxu0 %v550
    %v595 = vpop.f32.mrf.mxu0
    %v596 = vadd.f32 0.0, %v595
    %597 = vdwg.mxu0
    %v598 = vmul.f32 %v545, %v576
    %v599 = vmul.f32 %v546, %v596
    %v600 = vld [vmem:[#allocation13] sm:$0xff]
    %v601 = vld [vmem:[#allocation13 + $0x8] sm:$0xff]
    %v602 = vld [vmem:[#allocation13 + $0x10] sm:$0xff]
    %v603 = vld [vmem:[#allocation13 + $0x18] sm:$0xff]
    %v604 = vld [vmem:[#allocation13 + $0x20] sm:$0xff]
    %v605 = vld [vmem:[#allocation13 + $0x28] sm:$0xff]
    %v606 = vld [vmem:[#allocation13 + $0x30] sm:$0xff]
    %v607 = vld [vmem:[#allocation13 + $0x38] sm:$0xff]
    %v608 = vld [vmem:[#allocation13 + $0x40] sm:$0xff]
    %v609 = vld [vmem:[#allocation13 + $0x48] sm:$0xff]
    %v610 = vld [vmem:[#allocation13 + $0x50] sm:$0xff]
    %v611 = vld [vmem:[#allocation13 + $0x58] sm:$0xff]
    %v612 = vld [vmem:[#allocation13 + $0x60] sm:$0xff]
    %v613 = vld [vmem:[#allocation13 + $0x68] sm:$0xff]
    %v614 = vld [vmem:[#allocation13 + $0x70] sm:$0xff]
    %v615 = vld [vmem:[#allocation13 + $0x78] sm:$0xff]
    %v616 = vld [vmem:[#allocation13 + $0x80] sm:$0xff]
    %v617 = vld [vmem:[#allocation13 + $0x88] sm:$0xff]
    %v618 = vld [vmem:[#allocation13 + $0x90] sm:$0xff]
    %v619 = vld [vmem:[#allocation13 + $0x98] sm:$0xff]
    %v620 = vld [vmem:[#allocation13 + $0xa0] sm:$0xff]
    %v621 = vld [vmem:[#allocation13 + $0xa8] sm:$0xff]
    %v622 = vld [vmem:[#allocation13 + $0xb0] sm:$0xff]
    %v623 = vld [vmem:[#allocation13 + $0xb8] sm:$0xff]
    %v624 = vld [vmem:[#allocation15] sm:$0x1]
    %v626 = vperm.slane %v624, 0
    %v629 = vsel %vm281, %v599, 0
    %631 = vmatpush.msra.mxu0 %v615
    %632 = vmatpush.msra.mxu0 %v614
    %633 = vmatpush.msra.mxu0 %v613
    %634 = vmatpush.msra.mxu0 %v612
    %635 = vmatpush.msra.mxu0 %v611
    %636 = vmatpush.msra.mxu0 %v610
    %637 = vmatpush.msra.mxu0 %v609
    %638 = vmatpush.msra.mxu0 %v608
    %639 = vmatpush.msra.mxu0 %v607
    %640 = vmatpush.msra.mxu0 %v606
    %641 = vmatpush.msra.mxu0 %v605
    %642 = vmatpush.msra.mxu0 %v604
    %643 = vmatpush.msra.mxu0 %v603
    %644 = vmatpush.msra.mxu0 %v602
    %645 = vmatpush.msra.mxu0 %v601
    %646 = vmatpush.msra.mxu0 %v600
    %647 = vmatmul.f32.gmra.mxu0 %v598
    %v648 = vpop.f32.mrf.mxu0
    %v649 = vadd.f32 %v626, %v648
    %650 = vdwg.mxu0
    %651 = vmatpush.msra.mxu0 0.0
    %652 = vmatpush.msra.mxu0 0.0
    %653 = vmatpush.msra.mxu0 0.0
    %654 = vmatpush.msra.mxu0 0.0
    %655 = vmatpush.msra.mxu0 0.0
    %656 = vmatpush.msra.mxu0 0.0
    %657 = vmatpush.msra.mxu0 0.0
    %658 = vmatpush.msra.mxu0 0.0
    %659 = vmatpush.msra.mxu0 %v623
    %660 = vmatpush.msra.mxu0 %v622
    %661 = vmatpush.msra.mxu0 %v621
    %662 = vmatpush.msra.mxu0 %v620
    %663 = vmatpush.msra.mxu0 %v619
    %664 = vmatpush.msra.mxu0 %v618
    %665 = vmatpush.msra.mxu0 %v617
    %666 = vmatpush.msra.mxu0 %v616
    %667 = vmatmul.f32.gmra.mxu0 %v629
    %v668 = vpop.f32.mrf.mxu0
    %v669 = vadd.f32 %v649, %v668
    %670 = vdwg.mxu0
    %v671 = vadd.f32 %v343, 1e-06
    %v672 = vlog2.pop %v671
    %v673 = vmul.f32 %v672, 0.6931472
    %v674 = vsel %vm208, %v673, 0.0
    %675 = vadd.xlane.f32.xlu0 %v674
    %v676 = vpop.xlane.xlu0 %675
    %v677 = vmul.f32 %v676, -0.0033333334
    %vm678 = vcmp.eq.s32.totalorder %v306, 2
    %v679 = vsel %vm678, %v677, %v669
    %680 = vst [vmem:[%s15] sm:$0xff] %v679
    // Predicated region
    $region98: #{qnetwork_forward.1} parent=1 // pred_check
      _
    $region99: #{qnetwork_forward.1} parent=1 // pred_check_branch
      %682 = sbr.rel (0) target = $region101
    $region100: #{qnetwork_forward.1} parent=1 // pred_region
      _
    $region101: #{qnetwork_forward.1} parent=1 // pred_fallthru
      _
    // Predicated region
    $region102: #{qnetwork_forward.1} parent=1 // pred_check
      _
    $region103: #{qnetwork_forward.1} parent=1 // pred_check_branch
      %684 = sbr.rel (0) target = $region105
    $region104: #{qnetwork_forward.1} parent=1 // pred_region
      _
    $region105: #{qnetwork_forward.1} parent=1 // pred_fallthru
      _
    %685 = vsyncpa [#allocation3], 1
    %686 = vsyncpa [#allocation5], 1
    %687 = vsyncpa [#allocation8], 1
    %688 = vsyncpa [#allocation11], 1
    %689 = vsyncpa [#allocation14], 1

</llo_original>
